<compile_context>
chip_gen: v6e
topology: v6e:2x2x1
jax: 0.10.0
libtpu: 0.0.40
codegen_flags: <defaults>
</compile_context>

<pallas_src>
import math
import functools

import jax
import jax.numpy as jnp
from jax.experimental import pallas as pl
from jax.experimental.pallas import tpu as pltpu

BN_EPS = 1e-5
TAPS = 7            # widest branch kernel size (k=7, pad=3)
PAD = TAPS // 2
LANE = 128


def _round_up(x, m):
    return (x + m - 1) // m * m


# ---------------------------------------------------------------------------
# Fused kernel:  relu((im2col(x) @ W) * scale + shift)  ->  maxpool over rows.
#   x_ref     : (tl + 6, Cin)       bf16   halo'd activation block
#   w_ref     : (7*Cin, tn)         bf16   combined conv weight (tap-major K)
#   scale_ref : (1, tn)             f32    folded BN scale
#   shift_ref : (1, tn)             f32    folded bias + BN shift
#   o_ref     : (tl // pool, tn)    bf16   pooled output block
#   y_ref     : (tl, tn)            f32    VMEM scratch (pre-pool activations)
# ---------------------------------------------------------------------------
def _msc_fused_kernel(x_ref, w_ref, scale_ref, shift_ref, o_ref, y_ref,
                      *, tl, cin, pool):
    x = x_ref[...]                                           # (tl+6, cin) bf16
    # In-kernel im2col: 7 tap views via static slices, 7 accumulated MXU dots.
    acc = jnp.dot(x[0:tl, :], w_ref[0:cin, :],
                  preferred_element_type=jnp.float32)
    for t in range(1, TAPS):
        acc = acc + jnp.dot(x[t:t + tl, :],
                            w_ref[t * cin:(t + 1) * cin, :],
                            preferred_element_type=jnp.float32)
    y = jnp.maximum(acc * scale_ref[...] + shift_ref[...], 0.0)   # bias+BN+ReLU

    if pool == 1:
        o_ref[...] = y.astype(o_ref.dtype)
    else:
        # MaxPool1d over groups of `pool` consecutive rows, done as a running
        # max over strided row reads (no sublane-axis reduction).
        y_ref[...] = y
        lout_b = tl // pool
        pooled = y_ref[pl.ds(0, lout_b, stride=pool), :]
        for p in range(1, pool):
            pooled = jnp.maximum(pooled, y_ref[pl.ds(p, lout_b, stride=pool), :])
        o_ref[...] = pooled.astype(o_ref.dtype)


# ---------------------------------------------------------------------------
# Parameter construction (deterministic, synthetic).  Weights are combined,
# padded and cast to bf16 once here — never inside the forward pass.
# ---------------------------------------------------------------------------
def init_msc1d_params(key, in_channels, out_channels, bn=True):
    assert out_channels % 4 == 0
    c4 = out_channels // 4
    ksizes = (1, 3, 5, 7)
    keys = jax.random.split(key, 2 * len(ksizes) + 4)

    w_comb = jnp.zeros((TAPS, in_channels, out_channels), jnp.float32)
    raw_branches = []
    biases = []
    for bi, k in enumerate(ksizes):
        fan_in = in_channels * k
        bound = 1.0 / math.sqrt(fan_in)
        w = jax.random.uniform(keys[2 * bi], (c4, in_channels, k),
                               jnp.float32, -bound, bound)     # torch (O, I, K)
        b = jax.random.uniform(keys[2 * bi + 1], (c4,), jnp.float32,
                               -bound, bound)
        off = (TAPS - k) // 2                                  # centre the taps
        w_t = jnp.transpose(w, (2, 1, 0))                      # (k, Cin, c4)
        w_comb = w_comb.at[off:off + k, :, bi * c4:(bi + 1) * c4].set(w_t)
        raw_branches.append((w, b, k))
        biases.append(b)
    bias = jnp.concatenate(biases)                             # concat 1,3,5,7

    kb = keys[2 * len(ksizes):]
    if bn:
        gamma = jax.random.uniform(kb[0], (out_channels,), jnp.float32, 0.5, 1.5)
        beta = jax.random.normal(kb[1], (out_channels,), jnp.float32) * 0.1
        mean = jax.random.normal(kb[2], (out_channels,), jnp.float32) * 0.1
        var = jax.random.uniform(kb[3], (out_channels,), jnp.float32, 0.5, 1.5)
        scale = gamma / jnp.sqrt(var + BN_EPS)
        shift = (bias - mean) * scale + beta
        raw_bn = (gamma, beta, mean, var)
    else:
        scale = jnp.ones((out_channels,), jnp.float32)
        shift = bias
        raw_bn = None

    # K kept EXACT (= 7*Cin, no padding to 128); only Cout is padded to 128.
    K = TAPS * in_channels
    Np = _round_up(out_channels, LANE)
    w_p = jnp.zeros((K, Np), jnp.bfloat16)
    w_p = w_p.at[:, :out_channels].set(
        w_comb.reshape(K, out_channels).astype(jnp.bfloat16))
    scale_p = jnp.zeros((1, Np), jnp.float32).at[0, :out_channels].set(scale)
    shift_p = jnp.zeros((1, Np), jnp.float32).at[0, :out_channels].set(shift)

    fused = {"w": w_p, "scale": scale_p, "shift": shift_p}
    raw = {"branches": raw_branches, "bias": bias, "bn": raw_bn}
    return fused, raw


# ---------------------------------------------------------------------------
# Forward pass.  out_channels / pool_size are STATIC (never traced ints).
# ---------------------------------------------------------------------------
@functools.partial(jax.jit, static_argnames=("out_channels", "pool_size"))
def msc1d_forward(x_ncl, w_p, scale_p, shift_p, *, out_channels, pool_size):
    n, cin, l = x_ncl.shape
    kdim, np_ = w_p.shape
    assert kdim == TAPS * cin
    pool = int(pool_size)
    lout = l // pool
    assert lout >= 1, "input length shorter than pool size"
    l_eff = lout * pool

    # --- L tile: multiple of pool, capped so tiles stay VMEM-friendly.
    tl_cap = max((512 // pool) * pool, pool)
    tl = min(l_eff, tl_cap)
    n_lb = pl.cdiv(l_eff, tl)
    lp = n_lb * tl

    # --- Cout tile: Np is a multiple of 128 by construction.
    if np_ <= 512:
        tn = np_
    elif np_ % 512 == 0:
        tn = 512
    elif np_ % 256 == 0:
        tn = 256
    else:
        tn = 128

    # --- One cheap pass over the (small) input: NCL -> NLC, cast bf16,
    #     zero-pad the conv halo (+3 each side) and the L tail up to lp,
    #     then cut overlapping halo'd L blocks (6 extra rows per block).
    x_nlc = jnp.transpose(x_ncl, (0, 2, 1)).astype(jnp.bfloat16)
    pad_r = PAD + max(lp - l, 0)
    xp = jnp.pad(x_nlc, ((0, 0), (PAD, pad_r), (0, 0)))[:, :lp + 2 * PAD, :]
    xb = jnp.stack([xp[:, b * tl:b * tl + tl + 2 * PAD, :]
                    for b in range(n_lb)], axis=1)
    xb = xb.reshape(n * n_lb, tl + 2 * PAD, cin)

    lout_b = tl // pool
    grid = (n * n_lb, np_ // tn)

    flops = 2 * (n * n_lb) * tl * (TAPS * cin) * np_
    bytes_accessed = (xb.size * 2 + w_p.size * 2
                      + (scale_p.size + shift_p.size) * 4
                      + n * n_lb * lout_b * np_ * 2)

    # Per-step VMEM need (double-buffered ins/outs + f32 accumulator/scratch);
    # never request less than the default scoped limit, cap well under v7x's
    # 64 MiB physical VMEM.
    need = (2 * ((tl + 2 * PAD) * cin * 2 + TAPS * cin * tn * 2 + 2 * tn * 4
                 + lout_b * tn * 2)
            + 2 * tl * tn * 4 + TAPS * tl * cin * 2)
    vmem_limit = int(min(max(2 * need, 32 * 1024 * 1024), 48 * 1024 * 1024))

    kernel = functools.partial(_msc_fused_kernel, tl=tl, cin=cin, pool=pool)
    out = pl.pallas_call(
        kernel,
        out_shape=jax.ShapeDtypeStruct((n * n_lb, lout_b, np_), jnp.bfloat16),
        grid=grid,
        in_specs=[
            pl.BlockSpec((None, tl + 2 * PAD, cin), lambda m, j: (m, 0, 0)),
            pl.BlockSpec((TAPS * cin, tn), lambda m, j: (0, j)),
            pl.BlockSpec((1, tn), lambda m, j: (0, j)),
            pl.BlockSpec((1, tn), lambda m, j: (0, j)),
        ],
        out_specs=pl.BlockSpec((None, lout_b, tn), lambda m, j: (m, 0, j)),
        scratch_shapes=[pltpu.VMEM((tl, tn), jnp.float32)],
        compiler_params=pltpu.CompilerParams(
            dimension_semantics=("parallel", "parallel"),
            vmem_limit_bytes=vmem_limit),
        cost_estimate=pl.CostEstimate(
            flops=flops, transcendentals=0, bytes_accessed=bytes_accessed),
    )(xb, w_p, scale_p, shift_p)

    # Small post-ops on the smallest tensor: slice off Cout/L padding, NLC->NCL.
    y = out.reshape(n, n_lb * lout_b, np_)[:, :lout, :out_channels]
    return jnp.transpose(y, (0, 2, 1)).astype(jnp.float32)


# ---------------------------------------------------------------------------
# Pure-JAX reference (per-branch convs, independent of the fused-weight trick).
# ---------------------------------------------------------------------------
def reference_forward(x_ncl, raw, pool_size, use_bn=True):
    outs = []
    for (w, b, k) in raw["branches"]:
        pad = (k - 1) // 2
        y = jax.lax.conv_general_dilated(
            x_ncl, w, window_strides=(1,), padding=[(pad, pad)],
            dimension_numbers=("NCH", "OIH", "NCH"))
        outs.append(y + b[None, :, None])
    y = jnp.concatenate(outs, axis=1)
    if use_bn:
        gamma, beta, mean, var = raw["bn"]
        y = (y - mean[None, :, None]) / jnp.sqrt(var[None, :, None] + BN_EPS)
        y = y * gamma[None, :, None] + beta[None, :, None]
    y = jnp.maximum(y, 0.0)
    n, c, l = y.shape
    lout = l // pool_size
    y = y[:, :, :lout * pool_size].reshape(n, c, lout, pool_size)
    return jnp.max(y, axis=-1)


if __name__ == "__main__":
    BATCH, IN_CHANNELS, LENGTH = 2, 4, 16
    OUT_CHANNELS, POOL = 32, 2

    key = jax.random.PRNGKey(0)
    kx, kp = jax.random.split(key)
    x = jax.random.normal(kx, (BATCH, IN_CHANNELS, LENGTH), jnp.float32)
    fused, raw = init_msc1d_params(kp, IN_CHANNELS, OUT_CHANNELS, bn=True)

    out = msc1d_forward(x, fused["w"], fused["scale"], fused["shift"],
                        out_channels=OUT_CHANNELS, pool_size=POOL)
    out = jax.block_until_ready(out)
    assert out.shape == (BATCH, OUT_CHANNELS, LENGTH // POOL)
    assert bool(jnp.all(jnp.isfinite(out)))

    ref = reference_forward(x, raw, POOL, use_bn=True)
    max_err = float(jnp.max(jnp.abs(out - ref)))
    assert bool(jnp.allclose(out, ref, rtol=5e-2, atol=5e-2)), max_err

    print("KERNEL_OK")
</pallas_src>

<mosaic_0001>
module attributes {stable_mosaic.version = 11 : i64} {
  func.func @_msc_fused_kernel(%arg0: i32, %arg1: i32, %arg2: memref<1x22x4xbf16, #tpu.memory_space<vmem>>, %arg3: memref<28x128xbf16, #tpu.memory_space<vmem>>, %arg4: memref<1x128xf32, #tpu.memory_space<vmem>>, %arg5: memref<1x128xf32, #tpu.memory_space<vmem>>, %arg6: memref<1x8x128xbf16, #tpu.memory_space<vmem>>, %arg7: memref<16x128xf32, #tpu.memory_space<vmem>>) attributes {dimension_semantics = [#tpu.dimension_semantics<parallel>, #tpu.dimension_semantics<parallel>], iteration_bounds = array<i64: 2, 1>, scalar_prefetch = 0 : i64, scratch_operands = 1 : i64, tpu.core_type = #tpu.core_type<tc>, window_params = [{transform_indices = @transform_0, window_bounds = array<i64: 1, 22, 4>}, {transform_indices = @transform_1, window_bounds = array<i64: 28, 128>}, {transform_indices = @transform_2, window_bounds = array<i64: 1, 128>}, {transform_indices = @transform_3, window_bounds = array<i64: 1, 128>}, {transform_indices = @transform_4, window_bounds = array<i64: 1, 8, 128>}]} {
    %c0 = arith.constant 0 : index
    %c0_0 = arith.constant 0 : index
    %c0_1 = arith.constant 0 : index
    %0 = vector.load %arg2[%c0, %c0_0, %c0_1] : memref<1x22x4xbf16, #tpu.memory_space<vmem>>, vector<1x22x4xbf16>
    %1 = vector.shape_cast %0 : vector<1x22x4xbf16> to vector<22x4xbf16>
    %2 = vector.extract_strided_slice %1 {offsets = [0, 0], sizes = [16, 4], strides = [1, 1]} : vector<22x4xbf16> to vector<16x4xbf16>
    %c0_2 = arith.constant 0 : index
    %c0_3 = arith.constant 0 : index
    %3 = vector.load %arg3[%c0_2, %c0_3] : memref<28x128xbf16, #tpu.memory_space<vmem>>, vector<4x128xbf16>
    %cst = arith.constant dense<0.000000e+00> : vector<16x128xf32>
    %4 = tpu.matmul %2, %3, %cst {dimension_numbers = #tpu.dot_dimension_numbers<[1], [0], [0], [1], [0, 0, 1, 1], [], []>} : vector<16x4xbf16>, vector<4x128xbf16>, vector<16x128xf32> -> vector<16x128xf32>
    %5 = vector.extract_strided_slice %1 {offsets = [1, 0], sizes = [16, 4], strides = [1, 1]} : vector<22x4xbf16> to vector<16x4xbf16>
    %c4 = arith.constant 4 : index
    %c0_4 = arith.constant 0 : index
    %6 = vector.load %arg3[%c4, %c0_4] : memref<28x128xbf16, #tpu.memory_space<vmem>>, vector<4x128xbf16>
    %cst_5 = arith.constant dense<0.000000e+00> : vector<16x128xf32>
    %7 = tpu.matmul %5, %6, %cst_5 {dimension_numbers = #tpu.dot_dimension_numbers<[1], [0], [0], [1], [0, 0, 1, 1], [], []>} : vector<16x4xbf16>, vector<4x128xbf16>, vector<16x128xf32> -> vector<16x128xf32>
    %8 = arith.addf %4, %7 : vector<16x128xf32>
    %9 = vector.extract_strided_slice %1 {offsets = [2, 0], sizes = [16, 4], strides = [1, 1]} : vector<22x4xbf16> to vector<16x4xbf16>
    %c8 = arith.constant 8 : index
    %c0_6 = arith.constant 0 : index
    %10 = vector.load %arg3[%c8, %c0_6] : memref<28x128xbf16, #tpu.memory_space<vmem>>, vector<4x128xbf16>
    %cst_7 = arith.constant dense<0.000000e+00> : vector<16x128xf32>
    %11 = tpu.matmul %9, %10, %cst_7 {dimension_numbers = #tpu.dot_dimension_numbers<[1], [0], [0], [1], [0, 0, 1, 1], [], []>} : vector<16x4xbf16>, vector<4x128xbf16>, vector<16x128xf32> -> vector<16x128xf32>
    %12 = arith.addf %8, %11 : vector<16x128xf32>
    %13 = vector.extract_strided_slice %1 {offsets = [3, 0], sizes = [16, 4], strides = [1, 1]} : vector<22x4xbf16> to vector<16x4xbf16>
    %c12 = arith.constant 12 : index
    %c0_8 = arith.constant 0 : index
    %14 = vector.load %arg3[%c12, %c0_8] : memref<28x128xbf16, #tpu.memory_space<vmem>>, vector<4x128xbf16>
    %cst_9 = arith.constant dense<0.000000e+00> : vector<16x128xf32>
    %15 = tpu.matmul %13, %14, %cst_9 {dimension_numbers = #tpu.dot_dimension_numbers<[1], [0], [0], [1], [0, 0, 1, 1], [], []>} : vector<16x4xbf16>, vector<4x128xbf16>, vector<16x128xf32> -> vector<16x128xf32>
    %16 = arith.addf %12, %15 : vector<16x128xf32>
    %17 = vector.extract_strided_slice %1 {offsets = [4, 0], sizes = [16, 4], strides = [1, 1]} : vector<22x4xbf16> to vector<16x4xbf16>
    %c16 = arith.constant 16 : index
    %c0_10 = arith.constant 0 : index
    %18 = vector.load %arg3[%c16, %c0_10] : memref<28x128xbf16, #tpu.memory_space<vmem>>, vector<4x128xbf16>
    %cst_11 = arith.constant dense<0.000000e+00> : vector<16x128xf32>
    %19 = tpu.matmul %17, %18, %cst_11 {dimension_numbers = #tpu.dot_dimension_numbers<[1], [0], [0], [1], [0, 0, 1, 1], [], []>} : vector<16x4xbf16>, vector<4x128xbf16>, vector<16x128xf32> -> vector<16x128xf32>
    %20 = arith.addf %16, %19 : vector<16x128xf32>
    %21 = vector.extract_strided_slice %1 {offsets = [5, 0], sizes = [16, 4], strides = [1, 1]} : vector<22x4xbf16> to vector<16x4xbf16>
    %c20 = arith.constant 20 : index
    %c0_12 = arith.constant 0 : index
    %22 = vector.load %arg3[%c20, %c0_12] : memref<28x128xbf16, #tpu.memory_space<vmem>>, vector<4x128xbf16>
    %cst_13 = arith.constant dense<0.000000e+00> : vector<16x128xf32>
    %23 = tpu.matmul %21, %22, %cst_13 {dimension_numbers = #tpu.dot_dimension_numbers<[1], [0], [0], [1], [0, 0, 1, 1], [], []>} : vector<16x4xbf16>, vector<4x128xbf16>, vector<16x128xf32> -> vector<16x128xf32>
    %24 = arith.addf %20, %23 : vector<16x128xf32>
    %25 = vector.extract_strided_slice %1 {offsets = [6, 0], sizes = [16, 4], strides = [1, 1]} : vector<22x4xbf16> to vector<16x4xbf16>
    %c24 = arith.constant 24 : index
    %c0_14 = arith.constant 0 : index
    %26 = vector.load %arg3[%c24, %c0_14] : memref<28x128xbf16, #tpu.memory_space<vmem>>, vector<4x128xbf16>
    %cst_15 = arith.constant dense<0.000000e+00> : vector<16x128xf32>
    %27 = tpu.matmul %25, %26, %cst_15 {dimension_numbers = #tpu.dot_dimension_numbers<[1], [0], [0], [1], [0, 0, 1, 1], [], []>} : vector<16x4xbf16>, vector<4x128xbf16>, vector<16x128xf32> -> vector<16x128xf32>
    %28 = arith.addf %24, %27 : vector<16x128xf32>
    %c0_16 = arith.constant 0 : index
    %c0_17 = arith.constant 0 : index
    %29 = vector.load %arg4[%c0_16, %c0_17] : memref<1x128xf32, #tpu.memory_space<vmem>>, vector<1x128xf32>
    %30 = vector.broadcast %29 : vector<1x128xf32> to vector<16x128xf32>
    %31 = arith.mulf %28, %30 : vector<16x128xf32>
    %c0_18 = arith.constant 0 : index
    %c0_19 = arith.constant 0 : index
    %32 = vector.load %arg5[%c0_18, %c0_19] : memref<1x128xf32, #tpu.memory_space<vmem>>, vector<1x128xf32>
    %33 = vector.broadcast %32 : vector<1x128xf32> to vector<16x128xf32>
    %34 = arith.addf %31, %33 : vector<16x128xf32>
    %cst_20 = arith.constant 0.000000e+00 : f32
    %35 = vector.broadcast %cst_20 : f32 to vector<16x128xf32>
    %36 = arith.maximumf %34, %35 : vector<16x128xf32>
    %c0_21 = arith.constant 0 : index
    %c0_22 = arith.constant 0 : index
    %37 = vector.load %arg7[%c0_21, %c0_22] : memref<16x128xf32, #tpu.memory_space<vmem>>, vector<16x128xf32>
    tpu.vector_store %arg7[%c0_21, %c0_22], %36 {strides = array<i32>} : memref<16x128xf32, #tpu.memory_space<vmem>>, vector<16x128xf32>,
    %c0_23 = arith.constant 0 : index
    %c0_24 = arith.constant 0 : index
    %38 = tpu.strided_load %arg7[%c0_23, %c0_24] {strides = array<i32: 2, 1>} : memref<16x128xf32, #tpu.memory_space<vmem>>, vector<8x128xf32>
    %c1 = arith.constant 1 : index
    %c0_25 = arith.constant 0 : index
    %39 = tpu.strided_load %arg7[%c1, %c0_25] {strides = array<i32: 2, 1>} : memref<16x128xf32, #tpu.memory_space<vmem>>, vector<8x128xf32>
    %40 = arith.maximumf %38, %39 : vector<8x128xf32>
    %41 = arith.truncf %40 : vector<8x128xf32> to vector<8x128xbf16>
    %c0_26 = arith.constant 0 : index
    %c0_27 = arith.constant 0 : index
    %c0_28 = arith.constant 0 : index
    %42 = vector.load %arg6[%c0_26, %c0_27, %c0_28] : memref<1x8x128xbf16, #tpu.memory_space<vmem>>, vector<1x8x128xbf16>
    %43 = vector.shape_cast %42 : vector<1x8x128xbf16> to vector<8x128xbf16>
    %44 = vector.shape_cast %41 : vector<8x128xbf16> to vector<1x8x128xbf16>
    tpu.vector_store %arg6[%c0_26, %c0_27, %c0_28], %44 {strides = array<i32>} : memref<1x8x128xbf16, #tpu.memory_space<vmem>>, vector<1x8x128xbf16>,
    return
  }
  func.func @transform_0(%arg0: i32, %arg1: i32) -> (i32, i32, i32) {
    %c0_i32 = arith.constant 0 : i32
    %c0_i32_0 = arith.constant 0 : i32
    %c0_i32_1 = arith.constant 0 : i32
    return %arg0, %c0_i32, %c0_i32_0 : i32, i32, i32
  }
  func.func @transform_1(%arg0: i32, %arg1: i32) -> (i32, i32) {
    %c0_i32 = arith.constant 0 : i32
    %c0_i32_0 = arith.constant 0 : i32
    return %c0_i32, %arg1 : i32, i32
  }
  func.func @transform_2(%arg0: i32, %arg1: i32) -> (i32, i32) {
    %c0_i32 = arith.constant 0 : i32
    %c0_i32_0 = arith.constant 0 : i32
    return %c0_i32, %arg1 : i32, i32
  }
  func.func @transform_3(%arg0: i32, %arg1: i32) -> (i32, i32) {
    %c0_i32 = arith.constant 0 : i32
    %c0_i32_0 = arith.constant 0 : i32
    return %c0_i32, %arg1 : i32, i32
  }
  func.func @transform_4(%arg0: i32, %arg1: i32) -> (i32, i32, i32) {
    %c0_i32 = arith.constant 0 : i32
    %c0_i32_0 = arith.constant 0 : i32
    return %arg0, %c0_i32, %arg1 : i32, i32, i32
  }
}

</mosaic_0001>

<llo_original>
// kernel: msc1d_forward.1
$region0: #{msc1d_forward.1}
  #allocation0 [shape = 'u32[]', space=smem, size = 0x4, offset = 0x4, fixed_abs, tag = 'smem constant byte address 0x4 - core index']
  #allocation1 [shape = 'u32[144,128]{1,0:T(1,128)}', space=vmem, size = 0x12000, scoped, tag = 'internal scratch']
  #allocation2 [shape = 'f32[16,128]{1,0:T(8,128)}', space=vmem, size = 0x2000, scoped, tag = 'scratch operand']
  %s0 = inlined_call_operand.vmem [shape: bf16[2,22,4], index: 0, kind: input, shape index: {}]
  %s1 = inlined_call_operand.vmem [shape: bf16[28,128], index: 1, kind: input, shape index: {}]
  %s2 = inlined_call_operand.vmem [shape: f32[1,128], index: 2, kind: input, shape index: {}]
  %s3 = inlined_call_operand.vmem [shape: f32[1,128], index: 3, kind: input, shape index: {}]
  %s4 = inlined_call_operand.vmem [shape: bf16[2,8,128], index: 4, kind: output, shape index: {}]
  %s5 = sld [smem:[#allocation0]]
  $region49: #{msc1d_forward.1} parent=0
    _
  %s7 = ssub.s32 1, %s5
  %s8 = scalar_select 0, %s7, %s5
  loop: start=0, step=1, limit=4
  $region2: #{msc1d_forward.1} parent=0 // loop_pre_header
    _
  $region3: #{msc1d_forward.1} parent=0 // loop_header
    %s10 = sphi 0, %s14
    %p11 = scmp.ge.s32.totalorder %s10, 4
    %s17 = sphi 0, %s29
    %s18 = sphi 0, %s25
    %s19 = sphi 0, %s17
    %s20 = sphi 0, %s18
    %s21 = sphi 0, %s19
    %s22 = sphi 0, %s20
    %s32 = sphi 0, %s34
    %s35 = sphi 0, %s32
    %s36 = sphi 0, %s35
    %s52 = sphi 0, %s36
    %s58 = sphi 0, %s60
    %s61 = sphi 0, %s58
    %s62 = sphi 0, %s61
    %s78 = sphi 0, %s62
    %s84 = sphi 0, %s86
    %s87 = sphi 0, %s84
    %s88 = sphi 0, %s87
    %s104 = sphi 0, %s88
    %s110 = sphi 0, %s112
    %s113 = sphi 0, %s110
    %s114 = sphi 0, %s113
    %s130 = sphi 0, %s114
    %s138 = sphi 0, %s140
    %s141 = sphi 0, %s138
    %s142 = sphi 0, %s141
    %s158 = sphi 0, %s142
  $region4: #{msc1d_forward.1} parent=0 // loop_header_branch
    %13 = sbr.rel (%p11) target = $region8
  $region5: #{msc1d_forward.1} parent=0 // loop_body
    %s15 = ssub.s32 %s10, 1
    %s16 = ssub.s32 %s10, 2
    %s23 = sadd.s32 1, %s18
    %p24 = scmp.ge.s32.totalorder %s23, 1
    %s25 = scalar_select %p24, 0, %s23
    %s26 = sadd.s32 1, %s17
    %s27 = scalar_select %p24, %s26, %s17
    %p28 = scmp.ge.s32.totalorder %s27, 2
    %s29 = scalar_select %p28, 0, %s27
    %s30 = ssub.s32 %s17, %s29
    %p31 = scmp.eq.s32.totalorder %s30, 0
    %s33 = sadd.s32 %s32, 1
    %s34 = scalar_select %p31, %s32, %s33
    %p37 = pneg %p31
    %p38 = scmp.eq.s32.totalorder %s10, 1
    %p39 = por %p37, %p38
    %p40 = scmp.ne.s32.totalorder %s32, %s35
    %p41 = scmp.eq.s32.totalorder %s10, 0
    %p42 = por %p40, %p41
    %p43 = scmp.ne.s32.totalorder %s32, %s35
    %p44 = scmp.eq.s32.totalorder %s15, 1
    %p45 = por %p43, %p44
    %p46 = scmp.ne.s32.totalorder %s35, %s36
    %p47 = scmp.eq.s32.totalorder %s15, 0
    %p48 = por %p46, %p47
    %p49 = scmp.ne.s32.totalorder %s35, %s36
    %p50 = scmp.eq.s32.totalorder %s16, 1
    %p51 = por %p49, %p50
    %p53 = scmp.ne.s32.totalorder %s36, %s52
    %p54 = scmp.eq.s32.totalorder %s16, 0
    %p55 = por %p53, %p54
    %s56 = ssub.s32 %s18, %s25
    %p57 = scmp.eq.s32.totalorder %s56, 0
    %s59 = sadd.s32 %s58, 1
    %s60 = scalar_select %p57, %s58, %s59
    %p63 = pneg %p57
    %p64 = scmp.eq.s32.totalorder %s10, 1
    %p65 = por %p63, %p64
    %p66 = scmp.ne.s32.totalorder %s58, %s61
    %p67 = scmp.eq.s32.totalorder %s10, 0
    %p68 = por %p66, %p67
    %p69 = scmp.ne.s32.totalorder %s58, %s61
    %p70 = scmp.eq.s32.totalorder %s15, 1
    %p71 = por %p69, %p70
    %p72 = scmp.ne.s32.totalorder %s61, %s62
    %p73 = scmp.eq.s32.totalorder %s15, 0
    %p74 = por %p72, %p73
    %p75 = scmp.ne.s32.totalorder %s61, %s62
    %p76 = scmp.eq.s32.totalorder %s16, 1
    %p77 = por %p75, %p76
    %p79 = scmp.ne.s32.totalorder %s62, %s78
    %p80 = scmp.eq.s32.totalorder %s16, 0
    %p81 = por %p79, %p80
    %s82 = ssub.s32 %s18, %s25
    %p83 = scmp.eq.s32.totalorder %s82, 0
    %s85 = sadd.s32 %s84, 1
    %s86 = scalar_select %p83, %s84, %s85
    %p89 = pneg %p83
    %p90 = scmp.eq.s32.totalorder %s10, 1
    %p91 = por %p89, %p90
    %p92 = scmp.ne.s32.totalorder %s84, %s87
    %p93 = scmp.eq.s32.totalorder %s10, 0
    %p94 = por %p92, %p93
    %p95 = scmp.ne.s32.totalorder %s84, %s87
    %p96 = scmp.eq.s32.totalorder %s15, 1
    %p97 = por %p95, %p96
    %p98 = scmp.ne.s32.totalorder %s87, %s88
    %p99 = scmp.eq.s32.totalorder %s15, 0
    %p100 = por %p98, %p99
    %p101 = scmp.ne.s32.totalorder %s87, %s88
    %p102 = scmp.eq.s32.totalorder %s16, 1
    %p103 = por %p101, %p102
    %p105 = scmp.ne.s32.totalorder %s88, %s104
    %p106 = scmp.eq.s32.totalorder %s16, 0
    %p107 = por %p105, %p106
    %s108 = ssub.s32 %s18, %s25
    %p109 = scmp.eq.s32.totalorder %s108, 0
    %s111 = sadd.s32 %s110, 1
    %s112 = scalar_select %p109, %s110, %s111
    %p115 = pneg %p109
    %p116 = scmp.eq.s32.totalorder %s10, 1
    %p117 = por %p115, %p116
    %p118 = scmp.ne.s32.totalorder %s110, %s113
    %p119 = scmp.eq.s32.totalorder %s10, 0
    %p120 = por %p118, %p119
    %p121 = scmp.ne.s32.totalorder %s110, %s113
    %p122 = scmp.eq.s32.totalorder %s15, 1
    %p123 = por %p121, %p122
    %p124 = scmp.ne.s32.totalorder %s113, %s114
    %p125 = scmp.eq.s32.totalorder %s15, 0
    %p126 = por %p124, %p125
    %p127 = scmp.ne.s32.totalorder %s113, %s114
    %p128 = scmp.eq.s32.totalorder %s16, 1
    %p129 = por %p127, %p128
    %p131 = scmp.ne.s32.totalorder %s114, %s130
    %p132 = scmp.eq.s32.totalorder %s16, 0
    %p133 = por %p131, %p132
    %s134 = ssub.s32 %s17, %s29
    %s135 = ssub.s32 %s18, %s25
    %s136 = sor.u32 %s134, %s135
    %p137 = scmp.eq.s32.totalorder %s136, 0
    %s139 = sadd.s32 %s138, 1
    %s140 = scalar_select %p137, %s138, %s139
    %p143 = pneg %p137
    %p144 = scmp.eq.s32.totalorder %s10, 1
    %p145 = por %p143, %p144
    %p146 = scmp.ne.s32.totalorder %s138, %s141
    %p147 = scmp.eq.s32.totalorder %s10, 0
    %p148 = por %p146, %p147
    %p149 = scmp.ne.s32.totalorder %s138, %s141
    %p150 = scmp.eq.s32.totalorder %s15, 1
    %p151 = por %p149, %p150
    %p152 = scmp.ne.s32.totalorder %s141, %s142
    %p153 = scmp.eq.s32.totalorder %s15, 0
    %p154 = por %p152, %p153
    %p155 = scmp.ne.s32.totalorder %s141, %s142
    %p156 = scmp.eq.s32.totalorder %s16, 1
    %p157 = por %p155, %p156
    %p159 = scmp.ne.s32.totalorder %s142, %s158
    %p160 = scmp.eq.s32.totalorder %s16, 0
    %p161 = por %p159, %p160
    %p162 = scmp.le.s32.totalorder 1, %s10
    %p163 = scmp.lt.s32.totalorder %s10, 3
    %p164 = pnand %p162, %p163
    %p165 = pneg %p164
    // Predicated region
    $region9: #{msc1d_forward.1} parent=5 // pred_check
      _
    $region10: #{msc1d_forward.1} parent=5 // pred_check_branch
      %167 = sbr.rel (%p164) target = $region12
    $region11: #{msc1d_forward.1} parent=5 // pred_region
      %s168 = ssub.s32 %s10, 1
      // Predicated region
      $region13: #{msc1d_forward.1} parent=11 // pred_check
        %p169 = pneg %p74
      $region14: #{msc1d_forward.1} parent=11 // pred_check_branch
        %171 = sbr.rel (%p169) target = $region16
      $region15: #{msc1d_forward.1} parent=11 // pred_region
        %p172 = scmp.lt.s32.totalorder %s20, 0
        %s173 = scalar_select %p172, %s20, 0
        %s174 = smul.addr %s173, 4
        %s175 = scalar_lea.vmem %s1, %s174
      $region16: #{msc1d_forward.1} parent=11 // pred_fallthru
        _
      // Predicated region
      $region17: #{msc1d_forward.1} parent=11 // pred_check
        %p176 = pneg %p100
      $region18: #{msc1d_forward.1} parent=11 // pred_check_branch
        %178 = sbr.rel (%p176) target = $region20
      $region19: #{msc1d_forward.1} parent=11 // pred_region
        %p179 = scmp.lt.s32.totalorder %s20, 0
        %s180 = scalar_select %p179, %s20, 0
        %s181 = scalar_lea.vmem %s2, %s180
      $region20: #{msc1d_forward.1} parent=11 // pred_fallthru
        _
      // Predicated region
      $region21: #{msc1d_forward.1} parent=11 // pred_check
        %p182 = pneg %p126
      $region22: #{msc1d_forward.1} parent=11 // pred_check_branch
        %184 = sbr.rel (%p182) target = $region24
      $region23: #{msc1d_forward.1} parent=11 // pred_region
        %p185 = scmp.lt.s32.totalorder %s20, 0
        %s186 = scalar_select %p185, %s20, 0
        %s187 = scalar_lea.vmem %s3, %s186
      $region24: #{msc1d_forward.1} parent=11 // pred_fallthru
        _
    $region12: #{msc1d_forward.1} parent=5 // pred_fallthru
      _
    %p188 = scmp.lt.s32.totalorder %s10, 2
    // Predicated region
    $region25: #{msc1d_forward.1} parent=5 // pred_check
      %p189 = pneg %p188
    $region26: #{msc1d_forward.1} parent=5 // pred_check_branch
      %191 = sbr.rel (%p189) target = $region28
    $region27: #{msc1d_forward.1} parent=5 // pred_region
      // Predicated region
      $region29: #{msc1d_forward.1} parent=27 // pred_check
        %p192 = pneg %p42
      $region30: #{msc1d_forward.1} parent=27 // pred_check_branch
        %194 = sbr.rel (%p192) target = $region32
      $region31: #{msc1d_forward.1} parent=27 // pred_region
        %p195 = scmp.lt.s32.totalorder %s17, 1
        %s196 = scalar_select %p195, %s17, 1
        %s197 = smul.addr %s196, 3
        %s198 = smul.addr %s197, 4
        %s199 = scalar_lea.vmem %s0, %s198
      $region32: #{msc1d_forward.1} parent=27 // pred_fallthru
        _
    $region28: #{msc1d_forward.1} parent=5 // pred_fallthru
      _
    %p200 = scmp.le.s32.totalorder 1, %s10
    %p201 = scmp.lt.s32.totalorder %s10, 3
    %p202 = pnand %p200, %p201
    %p203 = pneg %p202
    // Predicated region
    $region33: #{msc1d_forward.1} parent=5 // pred_check
      _
    $region34: #{msc1d_forward.1} parent=5 // pred_check_branch
      %205 = sbr.rel (%p202) target = $region36
    $region35: #{msc1d_forward.1} parent=5 // pred_region
      %s206 = ssub.s32 %s10, 1
      %p207 = scmp.lt.s32.totalorder %s19, 1
      %s208 = scalar_select %p207, %s19, 1
      %s209 = smul.addr %s208, 3
      %s210 = smul.addr %s209, 4
      %s211 = scalar_lea.vmem %s0, %s210
      %p212 = pneg %p48
      %p213 = pneg %p45
      %p214 = scmp.lt.s32.totalorder %s20, 0
      %s215 = scalar_select %p214, %s20, 0
      %s216 = smul.addr %s215, 4
      %s217 = scalar_lea.vmem %s1, %s216
      %p218 = pneg %p74
      %p219 = pneg %p71
      %p220 = scmp.lt.s32.totalorder %s20, 0
      %s221 = scalar_select %p220, %s20, 0
      %s222 = scalar_lea.vmem %s2, %s221
      %p223 = pneg %p100
      %p224 = pneg %p97
      %p225 = scmp.lt.s32.totalorder %s20, 0
      %s226 = scalar_select %p225, %s20, 0
      %s227 = scalar_lea.vmem %s3, %s226
      %p228 = pneg %p126
      %p229 = pneg %p123
      %p230 = pneg %p154
      %p231 = pneg %p151
      %p232 = scmp.lt.s32.totalorder %s19, 1
      %s233 = scalar_select %p232, %s19, 1
      %p234 = scmp.lt.s32.totalorder %s20, 0
      %s235 = scalar_select %p234, %s20, 0
      %s236 = sadd.s32 %s235, %s233
      %s237 = smul.addr %s236, 4
      %s238 = scalar_lea.vmem %s4, %s237
      %p239 = scmp.lt.s32.totalorder %s19, 1
      %s240 = scalar_select %p239, %s19, 1
      %s241 = smul.addr %s240, 3
      %s242 = smul.addr %s241, 4
      %s243 = scalar_lea.vmem %s0, %s242
      %p244 = scmp.lt.s32.totalorder %s20, 0
      %s245 = scalar_select %p244, %s20, 0
      %s246 = smul.addr %s245, 4
      %s247 = scalar_lea.vmem %s1, %s246
      %p248 = scmp.lt.s32.totalorder %s20, 0
      %s249 = scalar_select %p248, %s20, 0
      %s250 = scalar_lea.vmem %s2, %s249
      %p251 = scmp.lt.s32.totalorder %s20, 0
      %s252 = scalar_select %p251, %s20, 0
      %s253 = scalar_lea.vmem %s3, %s252
      %p254 = scmp.lt.s32.totalorder %s19, 1
      %s255 = scalar_select %p254, %s19, 1
      %p256 = scmp.lt.s32.totalorder %s20, 0
      %s257 = scalar_select %p256, %s20, 0
      %s258 = sadd.s32 %s257, %s255
      %s259 = smul.addr %s258, 4
      %s260 = scalar_lea.vmem %s4, %s259
      %v262 = vld [vmem:[%s243] sm:$0xf]
      %v263 = vld [vmem:[%s243 + $0x4] sm:$0xf]
      %v264 = vld [vmem:[%s243 + $0x8] sm:$0x7]
      %v265 = vld [vmem:[%s247] sm:$0x3]
      %v266 = vld [vmem:[%s247] sm:$0xc]
      %v270 = vunpack.c.l.b16 %v262
      %v271 = vunpack.c.l.b16 %v263
      %v272 = vunpack.c.l.b16 %v264
      %v273 = vpack.c.b16 %v271, %v270
      %v274 = vpack.c.b16 %v272, %v272
      %vm275 = vsmask.f32 7424
      %v277 = vshrl.u32 %v273, 16
      %v279 = vshll.u32 %v273, 16
      %v281 = vrot.slane %v279, 1
      %v282 = vor.u32 %v277, %v281
      %v284 = vshll.u32 %v274, 16
      %v286 = vrot.slane %v284, 1
      %v287 = vsel %vm275, %v282, %v286
      %v289 = vunpack.c.l.b16 %v266
      %v290 = vpack.c.b16 %v289, %v289
      %v291 = vrot.slane %v290, 2
      %vm292 = vcmask 31744
      %v294 = vsel %vm292, %v287, 0
      %vm296 = vcmask 1041408
      %v298 = vsel %vm296, %v291, 0
      %300 = vmatprep.subr.bf16.mxu0 0
      %301 = vmatpush1.bf16.msra.mxu0 0
      %302 = vmatprep.subr.bf16.mxu0 0
      %303 = vmatpush1.bf16.msra.mxu0 0
      %304 = vmatprep.subr.bf16.mxu0 0
      %305 = vmatpush1.bf16.msra.mxu0 0
      %306 = vmatprep.subr.bf16.mxu0 0
      %307 = vmatpush1.bf16.msra.mxu0 0
      %308 = vmatprep.subr.bf16.mxu0 0
      %309 = vmatpush1.bf16.msra.mxu0 0
      %310 = vmatprep.subr.bf16.mxu0 0
      %311 = vmatpush1.bf16.msra.mxu0 0
      %312 = vmatprep.subr.bf16.mxu0 0
      %313 = vmatpush1.bf16.msra.mxu0 0
      %314 = vmatprep.subr.bf16.mxu0 0
      %315 = vmatpush1.bf16.msra.mxu0 %v298
      %316 = vmatprep.subr.bf16.mxu0 0
      %317 = vmatpush2.bf16.msra.mxu0 0
      %318 = vmatprep.subr.bf16.mxu0 0
      %319 = vmatpush2.bf16.msra.mxu0 0
      %320 = vmatprep.subr.bf16.mxu0 0
      %321 = vmatpush2.bf16.msra.mxu0 0
      %322 = vmatprep.subr.bf16.mxu0 0
      %323 = vmatpush2.bf16.msra.mxu0 0
      %324 = vmatprep.subr.bf16.mxu0 0
      %325 = vmatpush2.bf16.msra.mxu0 0
      %326 = vmatprep.subr.bf16.mxu0 0
      %327 = vmatpush2.bf16.msra.mxu0 0
      %328 = vmatprep.subr.bf16.mxu0 0
      %329 = vmatpush2.bf16.msra.mxu0 0
      %330 = vmatprep.subr.bf16.mxu0 0
      %331 = vmatpush2.bf16.msra.mxu0 0
      %332 = vmatprep.mubr.bf16.mxu0 0
      %333 = vmatmul.mubr.bf16.gmra.mxu0 %v294
      %v334 = vpop.f32.mrf.mxu0
      %v335 = vadd.f32 0.0, %v334
      %v336 = vpop.f32.mrf.mxu0
      %v337 = vpop.f32.mrf.mxu0
      %v338 = vadd.f32 0.0, %v337
      %v339 = vpop.f32.mrf.mxu0
      %340 = vdwg.mxu0
      %v341 = vsel %vm292, %v273, 0
      %v344 = vsel %vm296, %v265, 0
      %346 = vmatprep.subr.bf16.mxu0 0
      %347 = vmatpush1.bf16.msra.mxu0 0
      %348 = vmatprep.subr.bf16.mxu0 0
      %349 = vmatpush1.bf16.msra.mxu0 0
      %350 = vmatprep.subr.bf16.mxu0 0
      %351 = vmatpush1.bf16.msra.mxu0 0
      %352 = vmatprep.subr.bf16.mxu0 0
      %353 = vmatpush1.bf16.msra.mxu0 0
      %354 = vmatprep.subr.bf16.mxu0 0
      %355 = vmatpush1.bf16.msra.mxu0 0
      %356 = vmatprep.subr.bf16.mxu0 0
      %357 = vmatpush1.bf16.msra.mxu0 0
      %358 = vmatprep.subr.bf16.mxu0 0
      %359 = vmatpush1.bf16.msra.mxu0 0
      %360 = vmatprep.subr.bf16.mxu0 0
      %361 = vmatpush1.bf16.msra.mxu0 %v344
      %362 = vmatprep.subr.bf16.mxu0 0
      %363 = vmatpush2.bf16.msra.mxu0 0
      %364 = vmatprep.subr.bf16.mxu0 0
      %365 = vmatpush2.bf16.msra.mxu0 0
      %366 = vmatprep.subr.bf16.mxu0 0
      %367 = vmatpush2.bf16.msra.mxu0 0
      %368 = vmatprep.subr.bf16.mxu0 0
      %369 = vmatpush2.bf16.msra.mxu0 0
      %370 = vmatprep.subr.bf16.mxu0 0
      %371 = vmatpush2.bf16.msra.mxu0 0
      %372 = vmatprep.subr.bf16.mxu0 0
      %373 = vmatpush2.bf16.msra.mxu0 0
      %374 = vmatprep.subr.bf16.mxu0 0
      %375 = vmatpush2.bf16.msra.mxu0 0
      %376 = vmatprep.subr.bf16.mxu0 0
      %377 = vmatpush2.bf16.msra.mxu0 0
      %378 = vmatprep.mubr.bf16.mxu0 0
      %379 = vmatmul.mubr.bf16.gmra.mxu0 %v341
      %v380 = vpop.f32.mrf.mxu0
      %v381 = vadd.f32 %v335, %v380
      %v382 = vpop.f32.mrf.mxu0
      %v383 = vpop.f32.mrf.mxu0
      %v384 = vadd.f32 %v338, %v383
      %v385 = vpop.f32.mrf.mxu0
      %386 = vdwg.mxu0
      %v387 = vld [vmem:[%s247 + $0x4] sm:$0x3]
      %vm388 = vcmask 1046528
      %v389 = vrot.slane %v273, 1
      %v390 = vrot.slane %v274, 1
      %v391 = vsel %vm388, %v389, %v390
      %v393 = vsel %vm292, %v391, 0
      %v396 = vsel %vm296, %v387, 0
      %398 = vmatprep.subr.bf16.mxu0 0
      %399 = vmatpush1.bf16.msra.mxu0 0
      %400 = vmatprep.subr.bf16.mxu0 0
      %401 = vmatpush1.bf16.msra.mxu0 0
      %402 = vmatprep.subr.bf16.mxu0 0
      %403 = vmatpush1.bf16.msra.mxu0 0
      %404 = vmatprep.subr.bf16.mxu0 0
      %405 = vmatpush1.bf16.msra.mxu0 0
      %406 = vmatprep.subr.bf16.mxu0 0
      %407 = vmatpush1.bf16.msra.mxu0 0
      %408 = vmatprep.subr.bf16.mxu0 0
      %409 = vmatpush1.bf16.msra.mxu0 0
      %410 = vmatprep.subr.bf16.mxu0 0
      %411 = vmatpush1.bf16.msra.mxu0 0
      %412 = vmatprep.subr.bf16.mxu0 0
      %413 = vmatpush1.bf16.msra.mxu0 %v396
      %414 = vmatprep.subr.bf16.mxu0 0
      %415 = vmatpush2.bf16.msra.mxu0 0
      %416 = vmatprep.subr.bf16.mxu0 0
      %417 = vmatpush2.bf16.msra.mxu0 0
      %418 = vmatprep.subr.bf16.mxu0 0
      %419 = vmatpush2.bf16.msra.mxu0 0
      %420 = vmatprep.subr.bf16.mxu0 0
      %421 = vmatpush2.bf16.msra.mxu0 0
      %422 = vmatprep.subr.bf16.mxu0 0
      %423 = vmatpush2.bf16.msra.mxu0 0
      %424 = vmatprep.subr.bf16.mxu0 0
      %425 = vmatpush2.bf16.msra.mxu0 0
      %426 = vmatprep.subr.bf16.mxu0 0
      %427 = vmatpush2.bf16.msra.mxu0 0
      %428 = vmatprep.subr.bf16.mxu0 0
      %429 = vmatpush2.bf16.msra.mxu0 0
      %430 = vmatprep.mubr.bf16.mxu0 0
      %431 = vmatmul.mubr.bf16.gmra.mxu0 %v393
      %v432 = vpop.f32.mrf.mxu0
      %v433 = vadd.f32 0.0, %v432
      %v434 = vpop.f32.mrf.mxu0
      %v435 = vpop.f32.mrf.mxu0
      %v436 = vadd.f32 0.0, %v435
      %v437 = vpop.f32.mrf.mxu0
      %438 = vdwg.mxu0
      %v439 = vadd.f32 %v381, %v433
      %v440 = vadd.f32 %v384, %v436
      %v441 = vld [vmem:[%s247 + $0x4] sm:$0xc]
      %vm442 = vsmask.f32 6400
      %v443 = vrot.slane %v277, 1
      %v444 = vrot.slane %v279, 2
      %v445 = vor.u32 %v443, %v444
      %v446 = vshrl.u32 %v274, 16
      %v448 = vrot.slane %v446, 1
      %v449 = vrot.slane %v284, 2
      %v450 = vor.u32 %v448, %v449
      %v451 = vsel %vm442, %v445, %v450
      %v453 = vunpack.c.l.b16 %v441
      %v454 = vpack.c.b16 %v453, %v453
      %v455 = vrot.slane %v454, 2
      %v457 = vsel %vm292, %v451, 0
      %v460 = vsel %vm296, %v455, 0
      %462 = vmatprep.subr.bf16.mxu0 0
      %463 = vmatpush1.bf16.msra.mxu0 0
      %464 = vmatprep.subr.bf16.mxu0 0
      %465 = vmatpush1.bf16.msra.mxu0 0
      %466 = vmatprep.subr.bf16.mxu0 0
      %467 = vmatpush1.bf16.msra.mxu0 0
      %468 = vmatprep.subr.bf16.mxu0 0
      %469 = vmatpush1.bf16.msra.mxu0 0
      %470 = vmatprep.subr.bf16.mxu0 0
      %471 = vmatpush1.bf16.msra.mxu0 0
      %472 = vmatprep.subr.bf16.mxu0 0
      %473 = vmatpush1.bf16.msra.mxu0 0
      %474 = vmatprep.subr.bf16.mxu0 0
      %475 = vmatpush1.bf16.msra.mxu0 0
      %476 = vmatprep.subr.bf16.mxu0 0
      %477 = vmatpush1.bf16.msra.mxu0 %v460
      %478 = vmatprep.subr.bf16.mxu0 0
      %479 = vmatpush2.bf16.msra.mxu0 0
      %480 = vmatprep.subr.bf16.mxu0 0
      %481 = vmatpush2.bf16.msra.mxu0 0
      %482 = vmatprep.subr.bf16.mxu0 0
      %483 = vmatpush2.bf16.msra.mxu0 0
      %484 = vmatprep.subr.bf16.mxu0 0
      %485 = vmatpush2.bf16.msra.mxu0 0
      %486 = vmatprep.subr.bf16.mxu0 0
      %487 = vmatpush2.bf16.msra.mxu0 0
      %488 = vmatprep.subr.bf16.mxu0 0
      %489 = vmatpush2.bf16.msra.mxu0 0
      %490 = vmatprep.subr.bf16.mxu0 0
      %491 = vmatpush2.bf16.msra.mxu0 0
      %492 = vmatprep.subr.bf16.mxu0 0
      %493 = vmatpush2.bf16.msra.mxu0 0
      %494 = vmatprep.mubr.bf16.mxu0 0
      %495 = vmatmul.mubr.bf16.gmra.mxu0 %v457
      %v496 = vpop.f32.mrf.mxu0
      %v497 = vadd.f32 0.0, %v496
      %v498 = vpop.f32.mrf.mxu0
      %v499 = vpop.f32.mrf.mxu0
      %v500 = vadd.f32 0.0, %v499
      %v501 = vpop.f32.mrf.mxu0
      %502 = vdwg.mxu0
      %v503 = vadd.f32 %v439, %v497
      %v504 = vadd.f32 %v440, %v500
      %v505 = vld [vmem:[%s247 + $0x8] sm:$0x3]
      %vm506 = vcmask 1045504
      %v507 = vrot.slane %v273, 2
      %v508 = vrot.slane %v274, 2
      %v509 = vsel %vm506, %v507, %v508
      %v511 = vsel %vm292, %v509, 0
      %v514 = vsel %vm296, %v505, 0
      %516 = vmatprep.subr.bf16.mxu0 0
      %517 = vmatpush1.bf16.msra.mxu0 0
      %518 = vmatprep.subr.bf16.mxu0 0
      %519 = vmatpush1.bf16.msra.mxu0 0
      %520 = vmatprep.subr.bf16.mxu0 0
      %521 = vmatpush1.bf16.msra.mxu0 0
      %522 = vmatprep.subr.bf16.mxu0 0
      %523 = vmatpush1.bf16.msra.mxu0 0
      %524 = vmatprep.subr.bf16.mxu0 0
      %525 = vmatpush1.bf16.msra.mxu0 0
      %526 = vmatprep.subr.bf16.mxu0 0
      %527 = vmatpush1.bf16.msra.mxu0 0
      %528 = vmatprep.subr.bf16.mxu0 0
      %529 = vmatpush1.bf16.msra.mxu0 0
      %530 = vmatprep.subr.bf16.mxu0 0
      %531 = vmatpush1.bf16.msra.mxu0 %v514
      %532 = vmatprep.subr.bf16.mxu0 0
      %533 = vmatpush2.bf16.msra.mxu0 0
      %534 = vmatprep.subr.bf16.mxu0 0
      %535 = vmatpush2.bf16.msra.mxu0 0
      %536 = vmatprep.subr.bf16.mxu0 0
      %537 = vmatpush2.bf16.msra.mxu0 0
      %538 = vmatprep.subr.bf16.mxu0 0
      %539 = vmatpush2.bf16.msra.mxu0 0
      %540 = vmatprep.subr.bf16.mxu0 0
      %541 = vmatpush2.bf16.msra.mxu0 0
      %542 = vmatprep.subr.bf16.mxu0 0
      %543 = vmatpush2.bf16.msra.mxu0 0
      %544 = vmatprep.subr.bf16.mxu0 0
      %545 = vmatpush2.bf16.msra.mxu0 0
      %546 = vmatprep.subr.bf16.mxu0 0
      %547 = vmatpush2.bf16.msra.mxu0 0
      %548 = vmatprep.mubr.bf16.mxu0 0
      %549 = vmatmul.mubr.bf16.gmra.mxu0 %v511
      %v550 = vpop.f32.mrf.mxu0
      %v551 = vadd.f32 0.0, %v550
      %v552 = vpop.f32.mrf.mxu0
      %v553 = vpop.f32.mrf.mxu0
      %v554 = vadd.f32 0.0, %v553
      %v555 = vpop.f32.mrf.mxu0
      %556 = vdwg.mxu0
      %v557 = vadd.f32 %v503, %v551
      %v558 = vadd.f32 %v504, %v554
      %v559 = vld [vmem:[%s247 + $0x8] sm:$0xc]
      %vm560 = vsmask.f32 5376
      %v561 = vrot.slane %v277, 2
      %v562 = vrot.slane %v279, 3
      %v563 = vor.u32 %v561, %v562
      %v564 = vrot.slane %v446, 2
      %v565 = vrot.slane %v284, 3
      %v566 = vor.u32 %v564, %v565
      %v567 = vsel %vm560, %v563, %v566
      %v569 = vunpack.c.l.b16 %v559
      %v570 = vpack.c.b16 %v569, %v569
      %v571 = vrot.slane %v570, 2
      %v573 = vsel %vm292, %v567, 0
      %v576 = vsel %vm296, %v571, 0
      %578 = vmatprep.subr.bf16.mxu0 0
      %579 = vmatpush1.bf16.msra.mxu0 0
      %580 = vmatprep.subr.bf16.mxu0 0
      %581 = vmatpush1.bf16.msra.mxu0 0
      %582 = vmatprep.subr.bf16.mxu0 0
      %583 = vmatpush1.bf16.msra.mxu0 0
      %584 = vmatprep.subr.bf16.mxu0 0
      %585 = vmatpush1.bf16.msra.mxu0 0
      %586 = vmatprep.subr.bf16.mxu0 0
      %587 = vmatpush1.bf16.msra.mxu0 0
      %588 = vmatprep.subr.bf16.mxu0 0
      %589 = vmatpush1.bf16.msra.mxu0 0
      %590 = vmatprep.subr.bf16.mxu0 0
      %591 = vmatpush1.bf16.msra.mxu0 0
      %592 = vmatprep.subr.bf16.mxu0 0
      %593 = vmatpush1.bf16.msra.mxu0 %v576
      %594 = vmatprep.subr.bf16.mxu0 0
      %595 = vmatpush2.bf16.msra.mxu0 0
      %596 = vmatprep.subr.bf16.mxu0 0
      %597 = vmatpush2.bf16.msra.mxu0 0
      %598 = vmatprep.subr.bf16.mxu0 0
      %599 = vmatpush2.bf16.msra.mxu0 0
      %600 = vmatprep.subr.bf16.mxu0 0
      %601 = vmatpush2.bf16.msra.mxu0 0
      %602 = vmatprep.subr.bf16.mxu0 0
      %603 = vmatpush2.bf16.msra.mxu0 0
      %604 = vmatprep.subr.bf16.mxu0 0
      %605 = vmatpush2.bf16.msra.mxu0 0
      %606 = vmatprep.subr.bf16.mxu0 0
      %607 = vmatpush2.bf16.msra.mxu0 0
      %608 = vmatprep.subr.bf16.mxu0 0
      %609 = vmatpush2.bf16.msra.mxu0 0
      %610 = vmatprep.mubr.bf16.mxu0 0
      %611 = vmatmul.mubr.bf16.gmra.mxu0 %v573
      %v612 = vpop.f32.mrf.mxu0
      %v613 = vadd.f32 0.0, %v612
      %v614 = vpop.f32.mrf.mxu0
      %v615 = vpop.f32.mrf.mxu0
      %v616 = vadd.f32 0.0, %v615
      %v617 = vpop.f32.mrf.mxu0
      %618 = vdwg.mxu0
      %v619 = vadd.f32 %v557, %v613
      %v620 = vadd.f32 %v558, %v616
      %v621 = vld [vmem:[%s247 + $0xc] sm:$0x3]
      %vm622 = vcmask 1044480
      %v623 = vrot.slane %v273, 3
      %v624 = vrot.slane %v274, 3
      %v625 = vsel %vm622, %v623, %v624
      %v627 = vsel %vm292, %v625, 0
      %v630 = vsel %vm296, %v621, 0
      %632 = vmatprep.subr.bf16.mxu0 0
      %633 = vmatpush1.bf16.msra.mxu0 0
      %634 = vmatprep.subr.bf16.mxu0 0
      %635 = vmatpush1.bf16.msra.mxu0 0
      %636 = vmatprep.subr.bf16.mxu0 0
      %637 = vmatpush1.bf16.msra.mxu0 0
      %638 = vmatprep.subr.bf16.mxu0 0
      %639 = vmatpush1.bf16.msra.mxu0 0
      %640 = vmatprep.subr.bf16.mxu0 0
      %641 = vmatpush1.bf16.msra.mxu0 0
      %642 = vmatprep.subr.bf16.mxu0 0
      %643 = vmatpush1.bf16.msra.mxu0 0
      %644 = vmatprep.subr.bf16.mxu0 0
      %645 = vmatpush1.bf16.msra.mxu0 0
      %646 = vmatprep.subr.bf16.mxu0 0
      %647 = vmatpush1.bf16.msra.mxu0 %v630
      %648 = vmatprep.subr.bf16.mxu0 0
      %649 = vmatpush2.bf16.msra.mxu0 0
      %650 = vmatprep.subr.bf16.mxu0 0
      %651 = vmatpush2.bf16.msra.mxu0 0
      %652 = vmatprep.subr.bf16.mxu0 0
      %653 = vmatpush2.bf16.msra.mxu0 0
      %654 = vmatprep.subr.bf16.mxu0 0
      %655 = vmatpush2.bf16.msra.mxu0 0
      %656 = vmatprep.subr.bf16.mxu0 0
      %657 = vmatpush2.bf16.msra.mxu0 0
      %658 = vmatprep.subr.bf16.mxu0 0
      %659 = vmatpush2.bf16.msra.mxu0 0
      %660 = vmatprep.subr.bf16.mxu0 0
      %661 = vmatpush2.bf16.msra.mxu0 0
      %662 = vmatprep.subr.bf16.mxu0 0
      %663 = vmatpush2.bf16.msra.mxu0 0
      %664 = vmatprep.mubr.bf16.mxu0 0
      %665 = vmatmul.mubr.bf16.gmra.mxu0 %v627
      %v666 = vpop.f32.mrf.mxu0
      %v667 = vadd.f32 0.0, %v666
      %v668 = vpop.f32.mrf.mxu0
      %v669 = vpop.f32.mrf.mxu0
      %v670 = vadd.f32 0.0, %v669
      %v671 = vpop.f32.mrf.mxu0
      %672 = vdwg.mxu0
      %v673 = vadd.f32 %v619, %v667
      %v674 = vadd.f32 %v620, %v670
      %v675 = vld [vmem:[%s250] sm:$0x1]
      %v677 = vlaneseq
      %v678 = vshrl.u32 %v677, 7
      %v679 = vsub.s32 0, %v678
      %v680 = vrot.slane %v675, %v679
      %v682 = vmul.f32 %v673, %v680
      %v683 = vmul.f32 %v674, %v680
      %v684 = vld [vmem:[%s253] sm:$0x1]
      %v686 = vlaneseq
      %v687 = vshrl.u32 %v686, 7
      %v688 = vsub.s32 0, %v687
      %v689 = vrot.slane %v684, %v688
      %v691 = vadd.f32 %v682, %v689
      %v692 = vadd.f32 %v683, %v689
      %v693 = vmax.f32 %v691, 0.0
      %v694 = vmax.f32 %v692, 0.0
      %695 = vst [vmem:[#allocation2] sm:$0xff] %v693
      %696 = vst [vmem:[#allocation2 + $0x8] sm:$0xff] %v694
      %v697 = vld [vmem:[#allocation2] ss:$2 sm:$0xff]
      %s698 = scalar_lea.vmem [#allocation2], 1
      %v699 = vld [vmem:[%s698] ss:$2 sm:$0xff]
      %v700 = vmax.f32 %v697, %v699
      %v701 = vpack.c.bf16 %v700, %v700
      %702 = vst [vmem:[%s260] sm:$0xf] %v701
      %p703 = scmp.lt.s32.totalorder %s19, 1
      %s704 = scalar_select %p703, %s19, 1
      %p705 = scmp.lt.s32.totalorder %s20, 0
      %s706 = scalar_select %p705, %s20, 0
      %s707 = sadd.s32 %s706, %s704
      %s708 = smul.addr %s707, 4
      %s709 = scalar_lea.vmem %s4, %s708
      // Predicated region
      $region37: #{msc1d_forward.1} parent=35 // pred_check
        %p710 = pneg %p151
      $region38: #{msc1d_forward.1} parent=35 // pred_check_branch
        %712 = sbr.rel (%p710) target = $region40
      $region39: #{msc1d_forward.1} parent=35 // pred_region
        _
      $region40: #{msc1d_forward.1} parent=35 // pred_fallthru
        _
    $region36: #{msc1d_forward.1} parent=5 // pred_fallthru
      _
    %p713 = scmp.le.s32.totalorder 2, %s10
    // Predicated region
    $region41: #{msc1d_forward.1} parent=5 // pred_check
      %p714 = pneg %p713
    $region42: #{msc1d_forward.1} parent=5 // pred_check_branch
      %716 = sbr.rel (%p714) target = $region44
    $region43: #{msc1d_forward.1} parent=5 // pred_region
      %s717 = ssub.s32 %s10, 2
      // Predicated region
      $region45: #{msc1d_forward.1} parent=43 // pred_check
        %p718 = pneg %p157
      $region46: #{msc1d_forward.1} parent=43 // pred_check_branch
        %720 = sbr.rel (%p718) target = $region48
      $region47: #{msc1d_forward.1} parent=43 // pred_region
        %p721 = scmp.lt.s32.totalorder %s21, 1
        %s722 = scalar_select %p721, %s21, 1
        %p723 = scmp.lt.s32.totalorder %s22, 0
        %s724 = scalar_select %p723, %s22, 0
        %s725 = sadd.s32 %s724, %s722
        %s726 = smul.addr %s725, 4
        %s727 = scalar_lea.vmem %s4, %s726
      $region48: #{msc1d_forward.1} parent=43 // pred_fallthru
        _
    $region44: #{msc1d_forward.1} parent=5 // pred_fallthru
      _
  $region6: #{msc1d_forward.1} parent=0 // loop_footer
    %s14 = sadd.s32 1, %s10
  $region7: #{msc1d_forward.1} parent=0 // loop_footer_branch
    %9 = sbr.rel target = $region3
  $region8: #{msc1d_forward.1} parent=0 // loop_exit
    _

</llo_original>
